<compile_context>
chip_gen: v6e
topology: v6e:2x2x1
jax: 0.10.0
libtpu: 0.0.40
codegen_flags: <defaults>
</compile_context>

<pallas_src>
import functools

import jax
import jax.numpy as jnp
from jax import lax
from jax.experimental import pallas as pl
from jax.experimental.pallas import tpu as pltpu

_LANES = 512                        # lane width of each block (multiple of 128)
_MAX_BLOCK_ROWS = 2048              # max sublane rows per block -> 4 MiB f32/input
_SMALL_FAST_PATH_ELEMS = 64 * 1024  # below this, skip Pallas entirely
_VMEM_LIMIT_BYTES = 48 * 1024 * 1024


def _round_up(x: int, m: int) -> int:
    return ((x + m - 1) // m) * m


def _sublane_granule(*dtypes) -> int:
    """Min legal row granularity: 8 for 32-bit, 16 for 16-bit, 32 for 8-bit."""
    g = 8
    for dt in dtypes:
        bits = jnp.dtype(dt).itemsize * 8
        g = max(g, max(8, 256 // bits))
    return g


def _reduce_rows_to_8(x):
    """(r, _LANES) f32 -> (8, _LANES) via pure vreg adds (r % 8 == 0)."""
    r = x.shape[0]
    return jnp.sum(x.reshape(r // 8, 8, _LANES), axis=0)


def _l1_partial_kernel(pred_ref, y_ref, out_ref, *, valid_last_rows):
    """Per-block partial sums of |pred - y|, reduced over rows to (8, _LANES).

    Only the last grid block (if ragged) pays for the row mask.
    """
    d = jnp.abs(pred_ref[...].astype(jnp.float32) - y_ref[...].astype(jnp.float32))
    block_rows = d.shape[0]

    if valid_last_rows == block_rows:
        # Row count divides evenly: no masking anywhere.
        out_ref[...] = _reduce_rows_to_8(d)
    else:
        last = pl.num_programs(0) - 1

        @pl.when(pl.program_id(0) != last)
        def _():
            out_ref[...] = _reduce_rows_to_8(d)

        @pl.when(pl.program_id(0) == last)
        def _():
            # Mask the garbage rows of the ragged final block (jnp.where is a
            # select, so NaN/Inf garbage in masked rows does not propagate).
            row_ids = lax.broadcasted_iota(jnp.int32, d.shape, 0)
            out_ref[...] = _reduce_rows_to_8(
                jnp.where(row_ids < valid_last_rows, d, 0.0))


def _l1_single_block_kernel(pred_ref, y_ref, out_ref):
    """Single full-array block (block == array dims): sum rows to (1, _LANES)."""
    d = jnp.abs(pred_ref[...].astype(jnp.float32) - y_ref[...].astype(jnp.float32))
    out_ref[...] = jnp.sum(d, axis=0, keepdims=True)


def torch_loss_wrapper_l1(predictions: jax.Array,
                          target_y: jax.Array,
                          *,
                          force_pallas: bool = False,
                          block_rows: int | None = None) -> jax.Array:
    """Pallas equivalent of TorchLossWrapper(loss_fn='l1_loss')(pred, batch)."""
    assert predictions.shape == target_y.shape, "l1_loss expects matching shapes"
    total = predictions.size
    assert total > 0, "empty input"

    def _jnp_fallback():
        return jnp.mean(
            jnp.abs(predictions.astype(jnp.float32) - target_y.astype(jnp.float32)))

    # Fast path: for tiny inputs the kernel launch overhead dwarfs the work.
    # TODO(synk): make the threshold generation-dependent (raise on v7x).
    if not force_pallas and total < _SMALL_FAST_PATH_ELEMS:
        return _jnp_fallback()

    pred_flat = predictions.reshape(-1)
    y_flat = target_y.reshape(-1)

    rows = total // _LANES          # full lane-dense rows
    main = rows * _LANES
    if rows == 0:                   # everything is lane tail
        return _jnp_fallback()

    # Sub-512-element lane remainder: tiny jnp sum outside the kernel.
    if main != total:
        tail_sum = jnp.sum(
            jnp.abs(pred_flat[main:].astype(jnp.float32)
                    - y_flat[main:].astype(jnp.float32)))
        # TODO(synk): this contiguous prefix slice may still materialize one HBM
        # copy in XLA for lane-misaligned totals; fully zero-copy handling would
        # need a manual-DMA (memory_space=pl.ANY) path.
        pred2d = pred_flat[:main].reshape(rows, _LANES)
        y2d = y_flat[:main].reshape(rows, _LANES)
    else:
        tail_sum = None
        pred2d = pred_flat.reshape(rows, _LANES)   # free, row-major bitcast
        y2d = y_flat.reshape(rows, _LANES)

    granule = _sublane_granule(predictions.dtype, target_y.dtype)

    # Block-size selection: >= 2 blocks whenever possible (v7x megacore split),
    # capped at _MAX_BLOCK_ROWS, always a multiple of the dtype sublane granule.
    if block_rows is not None:
        block_rows = _round_up(max(block_rows, granule), granule)
        if block_rows >= rows:
            block_rows = None                      # single full-array block
    elif rows >= 2 * granule:
        block_rows = min(_MAX_BLOCK_ROWS, _round_up(pl.cdiv(rows, 2), granule))
    else:
        block_rows = None                          # single full-array block

    compiler_params = pltpu.CompilerParams(
        dimension_semantics=("parallel",),
        vmem_limit_bytes=_VMEM_LIMIT_BYTES,
    )

    if block_rows is None:
        # Single block equal to the full array dims (always a legal BlockSpec,
        # no masking needed, any row count / dtype).
        partials = pl.pallas_call(
            _l1_single_block_kernel,
            out_shape=jax.ShapeDtypeStruct((1, _LANES), jnp.float32),
            grid_spec=pltpu.PrefetchScalarGridSpec(
                num_scalar_prefetch=0,
                grid=(1,),
                in_specs=[
                    pl.BlockSpec((rows, _LANES), lambda i: (0, 0)),
                    pl.BlockSpec((rows, _LANES), lambda i: (0, 0)),
                ],
                out_specs=pl.BlockSpec((1, _LANES), lambda i: (0, 0)),
            ),
            compiler_params=compiler_params,
        )(pred2d, y2d)
    else:
        num_blocks = pl.cdiv(rows, block_rows)
        valid_last_rows = rows - (num_blocks - 1) * block_rows
        kernel = functools.partial(_l1_partial_kernel,
                                   valid_last_rows=valid_last_rows)
        partials = pl.pallas_call(
            kernel,
            out_shape=jax.ShapeDtypeStruct((num_blocks * 8, _LANES), jnp.float32),
            grid_spec=pltpu.PrefetchScalarGridSpec(
                num_scalar_prefetch=0,
                grid=(num_blocks,),
                in_specs=[
                    pl.BlockSpec((block_rows, _LANES), lambda i: (i, 0)),
                    pl.BlockSpec((block_rows, _LANES), lambda i: (i, 0)),
                ],
                out_specs=pl.BlockSpec((8, _LANES), lambda i: (i, 0)),
            ),
            compiler_params=compiler_params,
        )(pred2d, y2d)

    loss_sum = jnp.sum(partials)
    if tail_sum is not None:
        loss_sum = loss_sum + tail_sum
    return loss_sum / jnp.float32(total)


if __name__ == "__main__":
    key = jax.random.PRNGKey(0)
    k1, k2, k3, k4, k5, k6 = jax.random.split(key, 6)

    def ref_l1(p, y):
        return jnp.mean(jnp.abs(p.astype(jnp.float32) - y.astype(jnp.float32)))

    # --- Test 1: small property-prediction batch (64 graphs x 8 targets). ---
    p1 = jax.random.normal(k1, (64, 8), dtype=jnp.float32)
    y1 = jax.random.normal(k2, (64, 8), dtype=jnp.float32)
    ref1 = ref_l1(p1, y1)

    # 1a: default dispatch (small-input fast path).
    loss1 = jax.block_until_ready(torch_loss_wrapper_l1(p1, y1))
    assert jnp.allclose(loss1, ref1, rtol=1e-6, atol=1e-6), (loss1, ref1)

    # 1b: force the Pallas path (single full-array block, rows=1).
    loss1p = jax.block_until_ready(torch_loss_wrapper_l1(p1, y1, force_pallas=True))
    assert jnp.allclose(loss1p, ref1, rtol=1e-5, atol=1e-6), (loss1p, ref1)

    # --- Test 2: larger, non-divisible shape through the Pallas path. ---
    p2 = jax.random.normal(k3, (512, 193), dtype=jnp.float32)
    y2 = jax.random.normal(k4, (512, 193), dtype=jnp.float32)
    ref2 = ref_l1(p2, y2)

    # 2a: auto block size -> 2 blocks, ragged last block masked in-kernel.
    loss2 = jax.block_until_ready(torch_loss_wrapper_l1(p2, y2))
    assert jnp.allclose(loss2, ref2, rtol=1e-5, atol=1e-6), (loss2, ref2)

    # 2b: small forced block size -> 4 blocks, last block has 1 valid row.
    loss2m = jax.block_until_ready(
        torch_loss_wrapper_l1(p2, y2, force_pallas=True, block_rows=64))
    assert jnp.allclose(loss2m, ref2, rtol=1e-5, atol=1e-6), (loss2m, ref2)

    # --- Test 3: bf16 inputs, lane tail + ragged rows (dtype-aware granule). ---
    p3 = jax.random.normal(k5, (130, 193), dtype=jnp.bfloat16)
    y3 = jax.random.normal(k6, (130, 193), dtype=jnp.bfloat16)
    ref3 = ref_l1(p3, y3)

    loss3 = jax.block_until_ready(torch_loss_wrapper_l1(p3, y3, force_pallas=True))
    assert jnp.allclose(loss3, ref3, rtol=1e-4, atol=1e-5), (loss3, ref3)

    print("KERNEL_OK")
</pallas_src>

<mosaic_0001>
module attributes {stable_mosaic.version = 11 : i64} {
  func.func @_l1_single_block_kernel(%arg0: i32, %arg1: memref<1x512xf32, #tpu.memory_space<vmem>>, %arg2: memref<1x512xf32, #tpu.memory_space<vmem>>, %arg3: memref<1x512xf32, #tpu.memory_space<vmem>>) attributes {dimension_semantics = [#tpu.dimension_semantics<parallel>], iteration_bounds = array<i64: 1>, scalar_prefetch = 0 : i64, scratch_operands = 0 : i64, tpu.core_type = #tpu.core_type<tc>, window_params = [{pipeline_mode = #tpu.pipeline_mode<synchronous>, transform_indices = @transform_0, window_bounds = array<i64: 1, 512>}, {pipeline_mode = #tpu.pipeline_mode<synchronous>, transform_indices = @transform_1, window_bounds = array<i64: 1, 512>}, {pipeline_mode = #tpu.pipeline_mode<synchronous>, transform_indices = @transform_2, window_bounds = array<i64: 1, 512>}]} {
    %c0 = arith.constant 0 : index
    %c0_0 = arith.constant 0 : index
    %0 = vector.load %arg1[%c0, %c0_0] : memref<1x512xf32, #tpu.memory_space<vmem>>, vector<1x512xf32>
    %c0_1 = arith.constant 0 : index
    %c0_2 = arith.constant 0 : index
    %1 = vector.load %arg2[%c0_1, %c0_2] : memref<1x512xf32, #tpu.memory_space<vmem>>, vector<1x512xf32>
    %2 = arith.subf %0, %1 : vector<1x512xf32>
    %3 = math.absf %2 : vector<1x512xf32>
    %cst = arith.constant dense<0.000000e+00> : vector<512xf32>
    %4 = vector.multi_reduction <add>, %3, %cst [0] : vector<1x512xf32> to vector<512xf32>
    %5 = vector.shape_cast %4 : vector<512xf32> to vector<1x512xf32>
    %c0_3 = arith.constant 0 : index
    %c0_4 = arith.constant 0 : index
    %6 = vector.load %arg3[%c0_3, %c0_4] : memref<1x512xf32, #tpu.memory_space<vmem>>, vector<1x512xf32>
    tpu.vector_store %arg3[%c0_3, %c0_4], %5 {strides = array<i32>} : memref<1x512xf32, #tpu.memory_space<vmem>>, vector<1x512xf32>,
    return
  }
  func.func @transform_0(%arg0: i32) -> (i32, i32) {
    %c0_i32 = arith.constant 0 : i32
    %c0_i32_0 = arith.constant 0 : i32
    %c0_i32_1 = arith.constant 0 : i32
    return %c0_i32, %c0_i32_0 : i32, i32
  }
  func.func @transform_1(%arg0: i32) -> (i32, i32) {
    %c0_i32 = arith.constant 0 : i32
    %c0_i32_0 = arith.constant 0 : i32
    %c0_i32_1 = arith.constant 0 : i32
    return %c0_i32, %c0_i32_0 : i32, i32
  }
  func.func @transform_2(%arg0: i32) -> (i32, i32) {
    %c0_i32 = arith.constant 0 : i32
    %c0_i32_0 = arith.constant 0 : i32
    %c0_i32_1 = arith.constant 0 : i32
    return %c0_i32, %c0_i32_0 : i32, i32
  }
}

</mosaic_0001>

<llo_original>
// kernel: tpu_custom_call.1
$region0: #{tpu_custom_call.1}
  #allocation0 [shape = 'u32[]', space=smem, size = 0x4, offset = 0x4, fixed_abs, tag = 'smem constant byte address 0x4 - core index']
  #allocation1 [shape = 'u32[144,128]{1,0:T(1,128)}', space=vmem, size = 0x12000, scoped, tag = 'internal scratch']
  %s0 = inlined_call_operand.hbm [shape: f32[1,512], index: 0, kind: input, shape index: {}]
  %s1 = inlined_call_operand.hbm [shape: f32[1,512], index: 1, kind: input, shape index: {}]
  %s2 = inlined_call_operand.hbm [shape: f32[1,512], index: 2, kind: output, shape index: {}]
  %s3 = sld [smem:[#allocation0]]
  $region26: #{tpu_custom_call.1} parent=0
    _
  %s5 = ssub.s32 1, %s3
  %s6 = scalar_select 0, %s5, %s3
  $region1: #{tpu_custom_call.1} parent=0
    #allocation2 [shape = 'u8[2048]{0}', space=vmem, size = 0x800, scoped, tag = 'input window, operand 0, single buffered']
    #allocation3 [shape = 's32[1]{0}', space=sflag, size = 0x4, scoped, tag = 'scoped memory for tpu_custom_call.1']
    #allocation4 [shape = 's32[1]{0}', space=sflag, size = 0x4, scoped, tag = 'scoped memory for tpu_custom_call.1']
    #allocation5 [shape = 'u8[2048]{0}', space=vmem, size = 0x800, scoped, tag = 'input window, operand 1, single buffered']
    #allocation6 [shape = 's32[1]{0}', space=sflag, size = 0x4, scoped, tag = 'scoped memory for tpu_custom_call.1']
    #allocation7 [shape = 'u8[2048]{0}', space=vmem, size = 0x800, scoped, tag = 'output window, operand 0, single buffered']
    %7 = vsyncpa [#allocation3], 0
    %8 = vsyncpa [#allocation6], 0
    %9 = vsyncpa [#allocation4], 0
    // Predicated region
    $region2: #{tpu_custom_call.1} parent=1 // pred_check
      _
    $region3: #{tpu_custom_call.1} parent=1 // pred_check_branch
      %11 = sbr.rel (0) target = $region5
    $region4: #{tpu_custom_call.1} parent=1 // pred_region
      %s13 = ssub.s32 64, 64
      %14 = vsyncadd [#allocation3], %s13
      %s16 = sshll.u32 [#allocation2], 4
      %s17 = int_to_ptr.vmem [resolvable:$true] %s16
      %19 = dma.hbm_to_vmem [thread:$0]  %s0, 64, %s17, [#allocation3]
    $region5: #{tpu_custom_call.1} parent=1 // pred_fallthru
      _
    // Predicated region
    $region6: #{tpu_custom_call.1} parent=1 // pred_check
      _
    $region7: #{tpu_custom_call.1} parent=1 // pred_check_branch
      %21 = sbr.rel (0) target = $region9
    $region8: #{tpu_custom_call.1} parent=1 // pred_region
      %s23 = ssub.s32 64, 64
      %24 = vsyncadd [#allocation6], %s23
      %s26 = sshll.u32 [#allocation5], 4
      %s27 = int_to_ptr.vmem [resolvable:$true] %s26
      %29 = dma.hbm_to_vmem [thread:$0]  %s1, 64, %s27, [#allocation6]
    $region9: #{tpu_custom_call.1} parent=1 // pred_fallthru
      _
    // Predicated region
    $region10: #{tpu_custom_call.1} parent=1 // pred_check
      _
    $region11: #{tpu_custom_call.1} parent=1 // pred_check_branch
      %31 = sbr.rel (0) target = $region13
    $region12: #{tpu_custom_call.1} parent=1 // pred_region
      %32 = dma.done [#allocation3], 64
    $region13: #{tpu_custom_call.1} parent=1 // pred_fallthru
      _
    // Predicated region
    $region14: #{tpu_custom_call.1} parent=1 // pred_check
      _
    $region15: #{tpu_custom_call.1} parent=1 // pred_check_branch
      %34 = sbr.rel (0) target = $region17
    $region16: #{tpu_custom_call.1} parent=1 // pred_region
      %35 = dma.done [#allocation6], 64
    $region17: #{tpu_custom_call.1} parent=1 // pred_fallthru
      _
    %v36 = vld [vmem:[#allocation2] sm:$0xf]
    %v37 = vld [vmem:[#allocation5] sm:$0xf]
    %v38 = vsub.f32 %v36, %v37
    %v39 = vand.u32 2147483647, %v38
    %v40 = vadd.f32 %v39, 0.0
    %v41 = vlaneseq
    %vm42 = vcmp.ge.s32.totalorder %v41, 0
    %vm43 = vcmp.lt.s32.totalorder %v41, 512
    %vm44 = vmand %vm42, %vm43
    %45 = vst.msk [vmem:[#allocation7] sm:$0xf] %vm44, %v40
    // Predicated region
    $region18: #{tpu_custom_call.1} parent=1 // pred_check
      _
    $region19: #{tpu_custom_call.1} parent=1 // pred_check_branch
      %47 = sbr.rel (0) target = $region21
    $region20: #{tpu_custom_call.1} parent=1 // pred_region
      %s49 = ssub.s32 64, 64
      %50 = vsyncadd [#allocation4], %s49
      %s52 = sshll.u32 [#allocation7], 4
      %s53 = int_to_ptr.vmem [resolvable:$true] %s52
      %55 = dma.vmem_to_hbm [thread:$0]  %s53, 64, %s2, [#allocation4]
    $region21: #{tpu_custom_call.1} parent=1 // pred_fallthru
      _
    // Predicated region
    $region22: #{tpu_custom_call.1} parent=1 // pred_check
      _
    $region23: #{tpu_custom_call.1} parent=1 // pred_check_branch
      %57 = sbr.rel (0) target = $region25
    $region24: #{tpu_custom_call.1} parent=1 // pred_region
      %58 = dma.done [#allocation4], 64
    $region25: #{tpu_custom_call.1} parent=1 // pred_fallthru
      _
    %59 = vsyncpa [#allocation3], 1
    %60 = vsyncpa [#allocation6], 1
    %61 = vsyncpa [#allocation4], 1

</llo_original>
